<compile_context>
chip_gen: v6e
topology: v6e:2x2x1
jax: 0.10.0
libtpu: 0.0.40
codegen_flags: <defaults>
</compile_context>

<pallas_src>
import jax
import jax.numpy as jnp
from jax.experimental import pallas as pl
from jax.experimental.pallas import tpu as pltpu


def seq_model_kernel(x_ref, wxh_t_ref, whh_t_ref, wlin_t_ref, blin_ref, out_ref):
    """One batch group: full RNN unroll + lane-dense linear head.

    x_ref      : (T*Bb, I)   group's sequences, time-major rows (t*Bb + b)  VMEM
    wxh_t_ref  : (I, H)      W_xh transposed                                VMEM
    whh_t_ref  : (H, H)      W_hh transposed                                VMEM
    wlin_t_ref : (H, O_pad)  linear weight transposed, zero-padded          VMEM
    blin_ref   : (1,)        linear bias scalar (O == 1)                    SMEM
    out_ref    : (Bb, O_pad) lane-dense output slab
    """
    TB, _ = x_ref.shape
    Bb = out_ref.shape[0]
    T = TB // Bb

    # Hoisted input projection: one (T*Bb, I) x (I, H) matmul, stays 2-D.
    xh = jnp.dot(x_ref[...], wxh_t_ref[...], preferred_element_type=jnp.float32)

    whh_t = whh_t_ref[...]

    # Recurrence: h stays vreg-resident; static unroll (T small & static).
    # Row slices are static and sublane-aligned (Bb is a multiple of 8).
    h = jnp.zeros((Bb, whh_t.shape[0]), jnp.float32)
    for t in range(T):
        h = jnp.tanh(
            xh[t * Bb:(t + 1) * Bb, :]
            + jnp.dot(h, whh_t, preferred_element_type=jnp.float32)
        )

    # Lane-dense head: (Bb, H) @ (H, O_pad) + scalar bias (valid data in col 0).
    out_ref[...] = (
        jnp.dot(h, wlin_t_ref[...], preferred_element_type=jnp.float32)
        + blin_ref[0]
    )


def sequence_model_forward(x_bti, W_xh, W_hh, W_lin, b_lin, *, block_b=8):
    """x_bti: (B, T, I) float32 padded sequences. Returns (B, output_size).

    block_b: batch rows per grid step (multiple of 8). Raise toward 128 (v5e)
    or 128-256 (v6e/v7x) to fill MXU rows when the batch is large enough.
    """
    B, T, I = x_bti.shape
    H = W_xh.shape[0]
    O = W_lin.shape[0]
    assert O == 1, "kernel head assumes output_size == 1 (matches the module)"
    assert block_b % 8 == 0, "block_b must be a multiple of 8 (sublane tiling)"

    O_pad = 128  # lane-dense output width (O=1 padded; sliced after the call)

    # Pad batch up to a multiple of block_b (padded rows are discarded).
    B_pad = block_b * pl.cdiv(B, block_b)
    G = B_pad // block_b
    if B_pad != B:
        x_bti = jnp.pad(x_bti, ((0, B_pad - B), (0, 0), (0, 0)))

    # Pre-arrange in the wrapper so the kernel never reshapes:
    # group g, row t*block_b + b  <->  batch element g*block_b + b at time t.
    x_grp = (
        x_bti.reshape(G, block_b, T, I)
        .transpose(0, 2, 1, 3)
        .reshape(G, T * block_b, I)
        .astype(jnp.float32)
    )

    wxh_t = W_xh.T.astype(jnp.float32)                           # (I, H)
    whh_t = W_hh.T.astype(jnp.float32)                           # (H, H)
    wlin_t_pad = jnp.zeros((H, O_pad), jnp.float32).at[:, :O].set(
        W_lin.T.astype(jnp.float32))                             # (H, O_pad)
    blin = b_lin.reshape(O).astype(jnp.float32)                  # (1,) SMEM

    cost = pl.CostEstimate(
        flops=G * (2 * T * block_b * I * H
                   + 2 * T * block_b * H * H
                   + 2 * block_b * H * O_pad),
        transcendentals=G * T * block_b * H,
        bytes_accessed=4 * (G * T * block_b * I + I * H + H * H
                            + H * O_pad + O + G * block_b * O_pad),
    )

    # TODO(synk): seq_lengths is accepted by the PyTorch forward but unused
    # with padded equal-length input; a length-masked RNN would need per-step
    # jnp.where masking in the recurrence.
    out_pad = pl.pallas_call(
        seq_model_kernel,
        out_shape=jax.ShapeDtypeStruct((B_pad, O_pad), jnp.float32),
        grid=(G,),
        in_specs=[
            # Per-group x slab (squeezed leading group dim -> kernel sees 2-D).
            pl.BlockSpec((None, T * block_b, I), lambda g: (g, 0, 0)),
            # Weights: constant block index -> fetched once, resident.
            pl.BlockSpec((I, H), lambda g: (0, 0)),
            pl.BlockSpec((H, H), lambda g: (0, 0)),
            pl.BlockSpec((H, O_pad), lambda g: (0, 0)),
            # Scalar bias lives in SMEM.
            pl.BlockSpec(memory_space=pltpu.MemorySpace.SMEM),
        ],
        out_specs=pl.BlockSpec((block_b, O_pad), lambda g: (g, 0)),
        compiler_params=pltpu.CompilerParams(
            dimension_semantics=("parallel",),  # groups are independent -> v7x 2-TC
        ),
        cost_estimate=cost,
    )(x_grp, wxh_t, whh_t, wlin_t_pad, blin)

    return out_pad[:B, :O]


def reference_forward(x_bti, W_xh, W_hh, W_lin, b_lin):
    """Pure-JAX reference mirroring the PyTorch loop semantics."""
    B, T, I = x_bti.shape
    H = W_xh.shape[0]
    h = jnp.zeros((B, H), jnp.float32)
    for t in range(T):
        h = jnp.tanh(x_bti[:, t, :] @ W_xh.T + h @ W_hh.T)
    return h @ W_lin.T + b_lin


if __name__ == "__main__":
    # Small shapes consistent with the module (hidden_size=64, output_size=1,
    # batch_size=32); input_size picked at 32.
    B, T, I, H, O = 32, 8, 32, 64, 1

    key = jax.random.PRNGKey(0)
    k_x, k_wxh, k_whh, k_wl, k_bl = jax.random.split(key, 5)

    # Batch of equal-length (padded) sequences, batch-major layout (B, T, I).
    x = jax.random.normal(k_x, (B, T, I), dtype=jnp.float32)

    # Parameter init matching the PyTorch module's shapes.
    W_xh = jax.random.normal(k_wxh, (H, I), dtype=jnp.float32) * 0.01
    W_hh = jax.random.normal(k_whh, (H, H), dtype=jnp.float32) * 0.01
    bound = 1.0 / jnp.sqrt(H)
    W_lin = jax.random.uniform(k_wl, (O, H), dtype=jnp.float32,
                               minval=-bound, maxval=bound)
    b_lin = jax.random.uniform(k_bl, (O,), dtype=jnp.float32,
                               minval=-bound, maxval=bound)

    out = sequence_model_forward(x, W_xh, W_hh, W_lin, b_lin, block_b=8)
    out = jax.block_until_ready(out)

    ref = reference_forward(x, W_xh, W_hh, W_lin, b_lin)
    assert out.shape == (B, O)
    assert jnp.allclose(out, ref, atol=1e-5, rtol=1e-5)

    print("KERNEL_OK")
</pallas_src>

<mosaic_0001>
module attributes {stable_mosaic.version = 11 : i64} {
  func.func @seq_model_kernel(%arg0: i32, %arg1: memref<1x64x32xf32, #tpu.memory_space<vmem>>, %arg2: memref<32x64xf32, #tpu.memory_space<vmem>>, %arg3: memref<64x64xf32, #tpu.memory_space<vmem>>, %arg4: memref<64x128xf32, #tpu.memory_space<vmem>>, %arg5: memref<1xf32, #tpu.memory_space<smem>>, %arg6: memref<8x128xf32, #tpu.memory_space<vmem>>) attributes {dimension_semantics = [#tpu.dimension_semantics<parallel>], iteration_bounds = array<i64: 4>, scalar_prefetch = 0 : i64, scratch_operands = 0 : i64, tpu.core_type = #tpu.core_type<tc>, window_params = [{transform_indices = @transform_0, window_bounds = array<i64: 1, 64, 32>}, {pipeline_mode = #tpu.pipeline_mode<synchronous>, transform_indices = @transform_1, window_bounds = array<i64: 32, 64>}, {pipeline_mode = #tpu.pipeline_mode<synchronous>, transform_indices = @transform_2, window_bounds = array<i64: 64, 64>}, {pipeline_mode = #tpu.pipeline_mode<synchronous>, transform_indices = @transform_3, window_bounds = array<i64: 64, 128>}, {transform_indices = @transform_4, window_bounds = array<i64: 1>}, {transform_indices = @transform_5, window_bounds = array<i64: 8, 128>}]} {
    %c0 = arith.constant 0 : index
    %c0_0 = arith.constant 0 : index
    %c0_1 = arith.constant 0 : index
    %0 = vector.load %arg1[%c0, %c0_0, %c0_1] : memref<1x64x32xf32, #tpu.memory_space<vmem>>, vector<1x64x32xf32>
    %1 = vector.shape_cast %0 : vector<1x64x32xf32> to vector<64x32xf32>
    %c0_2 = arith.constant 0 : index
    %c0_3 = arith.constant 0 : index
    %2 = vector.load %arg2[%c0_2, %c0_3] : memref<32x64xf32, #tpu.memory_space<vmem>>, vector<32x64xf32>
    %cst = arith.constant dense<0.000000e+00> : vector<64x64xf32>
    %3 = tpu.matmul %1, %2, %cst {dimension_numbers = #tpu.dot_dimension_numbers<[1], [0], [0], [1], [0, 0, 1, 1], [], []>} : vector<64x32xf32>, vector<32x64xf32>, vector<64x64xf32> -> vector<64x64xf32>
    %c0_4 = arith.constant 0 : index
    %c0_5 = arith.constant 0 : index
    %4 = vector.load %arg3[%c0_4, %c0_5] : memref<64x64xf32, #tpu.memory_space<vmem>>, vector<64x64xf32>
    %cst_6 = arith.constant 0.000000e+00 : f32
    %5 = vector.broadcast %cst_6 : f32 to vector<8x64xf32>
    %6 = vector.extract_strided_slice %3 {offsets = [0, 0], sizes = [8, 64], strides = [1, 1]} : vector<64x64xf32> to vector<8x64xf32>
    %cst_7 = arith.constant dense<0.000000e+00> : vector<8x64xf32>
    %7 = tpu.matmul %5, %4, %cst_7 {dimension_numbers = #tpu.dot_dimension_numbers<[1], [0], [0], [1], [0, 0, 1, 1], [], []>} : vector<8x64xf32>, vector<64x64xf32>, vector<8x64xf32> -> vector<8x64xf32>
    %8 = arith.addf %6, %7 : vector<8x64xf32>
    %9 = math.tanh %8 : vector<8x64xf32>
    %10 = vector.extract_strided_slice %3 {offsets = [8, 0], sizes = [8, 64], strides = [1, 1]} : vector<64x64xf32> to vector<8x64xf32>
    %cst_8 = arith.constant dense<0.000000e+00> : vector<8x64xf32>
    %11 = tpu.matmul %9, %4, %cst_8 {dimension_numbers = #tpu.dot_dimension_numbers<[1], [0], [0], [1], [0, 0, 1, 1], [], []>} : vector<8x64xf32>, vector<64x64xf32>, vector<8x64xf32> -> vector<8x64xf32>
    %12 = arith.addf %10, %11 : vector<8x64xf32>
    %13 = math.tanh %12 : vector<8x64xf32>
    %14 = vector.extract_strided_slice %3 {offsets = [16, 0], sizes = [8, 64], strides = [1, 1]} : vector<64x64xf32> to vector<8x64xf32>
    %cst_9 = arith.constant dense<0.000000e+00> : vector<8x64xf32>
    %15 = tpu.matmul %13, %4, %cst_9 {dimension_numbers = #tpu.dot_dimension_numbers<[1], [0], [0], [1], [0, 0, 1, 1], [], []>} : vector<8x64xf32>, vector<64x64xf32>, vector<8x64xf32> -> vector<8x64xf32>
    %16 = arith.addf %14, %15 : vector<8x64xf32>
    %17 = math.tanh %16 : vector<8x64xf32>
    %18 = vector.extract_strided_slice %3 {offsets = [24, 0], sizes = [8, 64], strides = [1, 1]} : vector<64x64xf32> to vector<8x64xf32>
    %cst_10 = arith.constant dense<0.000000e+00> : vector<8x64xf32>
    %19 = tpu.matmul %17, %4, %cst_10 {dimension_numbers = #tpu.dot_dimension_numbers<[1], [0], [0], [1], [0, 0, 1, 1], [], []>} : vector<8x64xf32>, vector<64x64xf32>, vector<8x64xf32> -> vector<8x64xf32>
    %20 = arith.addf %18, %19 : vector<8x64xf32>
    %21 = math.tanh %20 : vector<8x64xf32>
    %22 = vector.extract_strided_slice %3 {offsets = [32, 0], sizes = [8, 64], strides = [1, 1]} : vector<64x64xf32> to vector<8x64xf32>
    %cst_11 = arith.constant dense<0.000000e+00> : vector<8x64xf32>
    %23 = tpu.matmul %21, %4, %cst_11 {dimension_numbers = #tpu.dot_dimension_numbers<[1], [0], [0], [1], [0, 0, 1, 1], [], []>} : vector<8x64xf32>, vector<64x64xf32>, vector<8x64xf32> -> vector<8x64xf32>
    %24 = arith.addf %22, %23 : vector<8x64xf32>
    %25 = math.tanh %24 : vector<8x64xf32>
    %26 = vector.extract_strided_slice %3 {offsets = [40, 0], sizes = [8, 64], strides = [1, 1]} : vector<64x64xf32> to vector<8x64xf32>
    %cst_12 = arith.constant dense<0.000000e+00> : vector<8x64xf32>
    %27 = tpu.matmul %25, %4, %cst_12 {dimension_numbers = #tpu.dot_dimension_numbers<[1], [0], [0], [1], [0, 0, 1, 1], [], []>} : vector<8x64xf32>, vector<64x64xf32>, vector<8x64xf32> -> vector<8x64xf32>
    %28 = arith.addf %26, %27 : vector<8x64xf32>
    %29 = math.tanh %28 : vector<8x64xf32>
    %30 = vector.extract_strided_slice %3 {offsets = [48, 0], sizes = [8, 64], strides = [1, 1]} : vector<64x64xf32> to vector<8x64xf32>
    %cst_13 = arith.constant dense<0.000000e+00> : vector<8x64xf32>
    %31 = tpu.matmul %29, %4, %cst_13 {dimension_numbers = #tpu.dot_dimension_numbers<[1], [0], [0], [1], [0, 0, 1, 1], [], []>} : vector<8x64xf32>, vector<64x64xf32>, vector<8x64xf32> -> vector<8x64xf32>
    %32 = arith.addf %30, %31 : vector<8x64xf32>
    %33 = math.tanh %32 : vector<8x64xf32>
    %34 = vector.extract_strided_slice %3 {offsets = [56, 0], sizes = [8, 64], strides = [1, 1]} : vector<64x64xf32> to vector<8x64xf32>
    %cst_14 = arith.constant dense<0.000000e+00> : vector<8x64xf32>
    %35 = tpu.matmul %33, %4, %cst_14 {dimension_numbers = #tpu.dot_dimension_numbers<[1], [0], [0], [1], [0, 0, 1, 1], [], []>} : vector<8x64xf32>, vector<64x64xf32>, vector<8x64xf32> -> vector<8x64xf32>
    %36 = arith.addf %34, %35 : vector<8x64xf32>
    %37 = math.tanh %36 : vector<8x64xf32>
    %c0_15 = arith.constant 0 : index
    %c0_16 = arith.constant 0 : index
    %38 = vector.load %arg4[%c0_15, %c0_16] : memref<64x128xf32, #tpu.memory_space<vmem>>, vector<64x128xf32>
    %cst_17 = arith.constant dense<0.000000e+00> : vector<8x128xf32>
    %39 = tpu.matmul %37, %38, %cst_17 {dimension_numbers = #tpu.dot_dimension_numbers<[1], [0], [0], [1], [0, 0, 1, 1], [], []>} : vector<8x64xf32>, vector<64x128xf32>, vector<8x128xf32> -> vector<8x128xf32>
    %c0_18 = arith.constant 0 : index
    %40 = memref.load %arg5[%c0_18] : memref<1xf32, #tpu.memory_space<smem>>
    %41 = vector.broadcast %40 : f32 to vector<8x128xf32>
    %42 = arith.addf %39, %41 : vector<8x128xf32>
    %c0_19 = arith.constant 0 : index
    %c0_20 = arith.constant 0 : index
    %43 = vector.load %arg6[%c0_19, %c0_20] : memref<8x128xf32, #tpu.memory_space<vmem>>, vector<8x128xf32>
    tpu.vector_store %arg6[%c0_19, %c0_20], %42 {strides = array<i32>} : memref<8x128xf32, #tpu.memory_space<vmem>>, vector<8x128xf32>,
    return
  }
  func.func @transform_0(%arg0: i32) -> (i32, i32, i32) {
    %c0_i32 = arith.constant 0 : i32
    %c0_i32_0 = arith.constant 0 : i32
    %c0_i32_1 = arith.constant 0 : i32
    return %arg0, %c0_i32, %c0_i32_0 : i32, i32, i32
  }
  func.func @transform_1(%arg0: i32) -> (i32, i32) {
    %c0_i32 = arith.constant 0 : i32
    %c0_i32_0 = arith.constant 0 : i32
    %c0_i32_1 = arith.constant 0 : i32
    return %c0_i32, %c0_i32_0 : i32, i32
  }
  func.func @transform_2(%arg0: i32) -> (i32, i32) {
    %c0_i32 = arith.constant 0 : i32
    %c0_i32_0 = arith.constant 0 : i32
    %c0_i32_1 = arith.constant 0 : i32
    return %c0_i32, %c0_i32_0 : i32, i32
  }
  func.func @transform_3(%arg0: i32) -> (i32, i32) {
    %c0_i32 = arith.constant 0 : i32
    %c0_i32_0 = arith.constant 0 : i32
    %c0_i32_1 = arith.constant 0 : i32
    return %c0_i32, %c0_i32_0 : i32, i32
  }
  func.func @transform_4(%arg0: i32) -> i32 {
    %c0_i32 = arith.constant 0 : i32
    %c0_i32_0 = arith.constant 0 : i32
    return %c0_i32 : i32
  }
  func.func @transform_5(%arg0: i32) -> (i32, i32) {
    %c0_i32 = arith.constant 0 : i32
    %c0_i32_0 = arith.constant 0 : i32
    return %arg0, %c0_i32 : i32, i32
  }
}

</mosaic_0001>

<llo_original>
// kernel: tpu_custom_call.1
$region0: #{tpu_custom_call.1}
  #allocation0 [shape = 'u32[]', space=smem, size = 0x4, offset = 0x4, fixed_abs, tag = 'smem constant byte address 0x4 - core index']
  #allocation1 [shape = 'u32[144,128]{1,0:T(1,128)}', space=vmem, size = 0x12000, scoped, tag = 'internal scratch']
  #allocation2 [shape = 'f32[1]{0:T(128)S(6)}', space=smem, size = 0x200, scoped, tag = 'scoped memory for tpu_custom_call.1']
  %s0 = inlined_call_operand.vmem [shape: f32[4,64,32], index: 0, kind: input, shape index: {}]
  %s1 = inlined_call_operand.vmem [shape: f32[32,64], index: 1, kind: input, shape index: {}]
  %s2 = inlined_call_operand.vmem [shape: f32[64,64], index: 2, kind: input, shape index: {}]
  %s3 = inlined_call_operand.vmem [shape: f32[64,128], index: 3, kind: input, shape index: {}]
  %s4 = inlined_call_operand.<no memory space> [shape: f32[1], index: 4, kind: input, shape index: {}]
  %s5 = inlined_call_operand.hbm [shape: f32[32,128], index: 5, kind: output, shape index: {}]
  %s6 = sld [smem:[#allocation0]]
  $region53: #{tpu_custom_call.1} parent=0
    _
  %s8 = ssub.s32 1, %s6
  %s9 = scalar_select 0, %s8, %s6
  %10 = sst [smem:[#allocation2]] %s4
  $region1: #{tpu_custom_call.1} parent=0
    #allocation3 [shape = 'u8[8192]{0}', space=vmem, size = 0x2000, scoped, tag = 'output window, operand 0']
    #allocation4 [shape = 's32[2]{0}', space=sflag, size = 0x8, scoped, tag = 'scoped memory for tpu_custom_call.1']
    %11 = vsyncpa [#allocation4], 0
    %s12 = scalar_lea.sflag [#allocation4], 1
    %13 = vsyncpa %s12, 0
    loop: start=0, step=1, limit=6
    $region2: #{tpu_custom_call.1} parent=1 // loop_pre_header
      _
    $region3: #{tpu_custom_call.1} parent=1 // loop_header
      %s15 = sphi 0, %s19
      %p16 = scmp.ge.s32.totalorder %s15, 6
      %s25 = sphi 0, %s27
      %s28 = sphi 0, %s25
      %s29 = sphi 0, %s28
      %s45 = sphi 0, %s29
      %s49 = sphi 0, %s49
      %s51 = sphi 0, %s49
      %s52 = sphi 0, %s51
      %s66 = sphi 0, %s52
      %s70 = sphi 0, %s70
      %s72 = sphi 0, %s70
      %s73 = sphi 0, %s72
      %s87 = sphi 0, %s73
      %s91 = sphi 0, %s91
      %s93 = sphi 0, %s91
      %s94 = sphi 0, %s93
      %s108 = sphi 0, %s94
      %s112 = sphi 0, %s112
      %s114 = sphi 0, %s112
      %s115 = sphi 0, %s114
      %s129 = sphi 0, %s115
      %s135 = sphi 0, %s137
      %s138 = sphi 0, %s135
      %s139 = sphi 0, %s138
      %s155 = sphi 0, %s139
    $region4: #{tpu_custom_call.1} parent=1 // loop_header_branch
      %18 = sbr.rel (%p16) target = $region8
    $region5: #{tpu_custom_call.1} parent=1 // loop_body
      %s20 = ssub.s32 %s15, 1
      %s21 = ssub.s32 %s15, 2
      %s22 = sadd.s32 %s15, 1
      %s23 = ssub.s32 %s15, %s22
      %p24 = scmp.eq.s32.totalorder %s23, 0
      %s26 = sadd.s32 %s25, 1
      %s27 = scalar_select %p24, %s25, %s26
      %p30 = pneg %p24
      %p31 = scmp.eq.s32.totalorder %s15, 3
      %p32 = por %p30, %p31
      %p33 = scmp.ne.s32.totalorder %s25, %s28
      %p34 = scmp.eq.s32.totalorder %s15, 0
      %p35 = por %p33, %p34
      %p36 = scmp.ne.s32.totalorder %s25, %s28
      %p37 = scmp.eq.s32.totalorder %s20, 3
      %p38 = por %p36, %p37
      %p39 = scmp.ne.s32.totalorder %s28, %s29
      %p40 = scmp.eq.s32.totalorder %s20, 0
      %p41 = por %p39, %p40
      %p42 = scmp.ne.s32.totalorder %s28, %s29
      %p43 = scmp.eq.s32.totalorder %s21, 3
      %p44 = por %p42, %p43
      %p46 = scmp.ne.s32.totalorder %s29, %s45
      %p47 = scmp.eq.s32.totalorder %s21, 0
      %p48 = por %p46, %p47
      %s50 = sadd.s32 %s49, 1
      %p53 = scmp.eq.s32.totalorder %s15, 3
      %p54 = scmp.ne.s32.totalorder %s49, %s51
      %p55 = scmp.eq.s32.totalorder %s15, 0
      %p56 = por %p54, %p55
      %p57 = scmp.ne.s32.totalorder %s49, %s51
      %p58 = scmp.eq.s32.totalorder %s20, 3
      %p59 = por %p57, %p58
      %p60 = scmp.ne.s32.totalorder %s51, %s52
      %p61 = scmp.eq.s32.totalorder %s20, 0
      %p62 = por %p60, %p61
      %p63 = scmp.ne.s32.totalorder %s51, %s52
      %p64 = scmp.eq.s32.totalorder %s21, 3
      %p65 = por %p63, %p64
      %p67 = scmp.ne.s32.totalorder %s52, %s66
      %p68 = scmp.eq.s32.totalorder %s21, 0
      %p69 = por %p67, %p68
      %s71 = sadd.s32 %s70, 1
      %p74 = scmp.eq.s32.totalorder %s15, 3
      %p75 = scmp.ne.s32.totalorder %s70, %s72
      %p76 = scmp.eq.s32.totalorder %s15, 0
      %p77 = por %p75, %p76
      %p78 = scmp.ne.s32.totalorder %s70, %s72
      %p79 = scmp.eq.s32.totalorder %s20, 3
      %p80 = por %p78, %p79
      %p81 = scmp.ne.s32.totalorder %s72, %s73
      %p82 = scmp.eq.s32.totalorder %s20, 0
      %p83 = por %p81, %p82
      %p84 = scmp.ne.s32.totalorder %s72, %s73
      %p85 = scmp.eq.s32.totalorder %s21, 3
      %p86 = por %p84, %p85
      %p88 = scmp.ne.s32.totalorder %s73, %s87
      %p89 = scmp.eq.s32.totalorder %s21, 0
      %p90 = por %p88, %p89
      %s92 = sadd.s32 %s91, 1
      %p95 = scmp.eq.s32.totalorder %s15, 3
      %p96 = scmp.ne.s32.totalorder %s91, %s93
      %p97 = scmp.eq.s32.totalorder %s15, 0
      %p98 = por %p96, %p97
      %p99 = scmp.ne.s32.totalorder %s91, %s93
      %p100 = scmp.eq.s32.totalorder %s20, 3
      %p101 = por %p99, %p100
      %p102 = scmp.ne.s32.totalorder %s93, %s94
      %p103 = scmp.eq.s32.totalorder %s20, 0
      %p104 = por %p102, %p103
      %p105 = scmp.ne.s32.totalorder %s93, %s94
      %p106 = scmp.eq.s32.totalorder %s21, 3
      %p107 = por %p105, %p106
      %p109 = scmp.ne.s32.totalorder %s94, %s108
      %p110 = scmp.eq.s32.totalorder %s21, 0
      %p111 = por %p109, %p110
      %s113 = sadd.s32 %s112, 1
      %p116 = scmp.eq.s32.totalorder %s15, 3
      %p117 = scmp.ne.s32.totalorder %s112, %s114
      %p118 = scmp.eq.s32.totalorder %s15, 0
      %p119 = por %p117, %p118
      %p120 = scmp.ne.s32.totalorder %s112, %s114
      %p121 = scmp.eq.s32.totalorder %s20, 3
      %p122 = por %p120, %p121
      %p123 = scmp.ne.s32.totalorder %s114, %s115
      %p124 = scmp.eq.s32.totalorder %s20, 0
      %p125 = por %p123, %p124
      %p126 = scmp.ne.s32.totalorder %s114, %s115
      %p127 = scmp.eq.s32.totalorder %s21, 3
      %p128 = por %p126, %p127
      %p130 = scmp.ne.s32.totalorder %s115, %s129
      %p131 = scmp.eq.s32.totalorder %s21, 0
      %p132 = por %p130, %p131
      %s133 = ssub.s32 %s15, %s22
      %p134 = scmp.eq.s32.totalorder %s133, 0
      %s136 = sadd.s32 %s135, 1
      %s137 = scalar_select %p134, %s135, %s136
      %p140 = pneg %p134
      %p141 = scmp.eq.s32.totalorder %s15, 3
      %p142 = por %p140, %p141
      %p143 = scmp.ne.s32.totalorder %s135, %s138
      %p144 = scmp.eq.s32.totalorder %s15, 0
      %p145 = por %p143, %p144
      %p146 = scmp.ne.s32.totalorder %s135, %s138
      %p147 = scmp.eq.s32.totalorder %s20, 3
      %p148 = por %p146, %p147
      %p149 = scmp.ne.s32.totalorder %s138, %s139
      %p150 = scmp.eq.s32.totalorder %s20, 0
      %p151 = por %p149, %p150
      %p152 = scmp.ne.s32.totalorder %s138, %s139
      %p153 = scmp.eq.s32.totalorder %s21, 3
      %p154 = por %p152, %p153
      %p156 = scmp.ne.s32.totalorder %s139, %s155
      %p157 = scmp.eq.s32.totalorder %s21, 0
      %p158 = por %p156, %p157
      %p159 = scmp.le.s32.totalorder 1, %s15
      %p160 = scmp.lt.s32.totalorder %s15, 5
      %p161 = pnand %p159, %p160
      %p162 = pneg %p161
      // Predicated region
      $region9: #{tpu_custom_call.1} parent=5 // pred_check
        _
      $region10: #{tpu_custom_call.1} parent=5 // pred_check_branch
        %164 = sbr.rel (%p161) target = $region12
      $region11: #{tpu_custom_call.1} parent=5 // pred_region
        %s165 = ssub.s32 %s15, 1
        // Predicated region
        $region13: #{tpu_custom_call.1} parent=11 // pred_check
          %p166 = pneg %p62
        $region14: #{tpu_custom_call.1} parent=11 // pred_check_branch
          %168 = sbr.rel (%p166) target = $region16
        $region15: #{tpu_custom_call.1} parent=11 // pred_region
          _
        $region16: #{tpu_custom_call.1} parent=11 // pred_fallthru
          _
        // Predicated region
        $region17: #{tpu_custom_call.1} parent=11 // pred_check
          %p169 = pneg %p83
        $region18: #{tpu_custom_call.1} parent=11 // pred_check_branch
          %171 = sbr.rel (%p169) target = $region20
        $region19: #{tpu_custom_call.1} parent=11 // pred_region
          _
        $region20: #{tpu_custom_call.1} parent=11 // pred_fallthru
          _
        // Predicated region
        $region21: #{tpu_custom_call.1} parent=11 // pred_check
          %p172 = pneg %p104
        $region22: #{tpu_custom_call.1} parent=11 // pred_check_branch
          %174 = sbr.rel (%p172) target = $region24
        $region23: #{tpu_custom_call.1} parent=11 // pred_region
          _
        $region24: #{tpu_custom_call.1} parent=11 // pred_fallthru
          _
        // Predicated region
        $region25: #{tpu_custom_call.1} parent=11 // pred_check
          %p175 = pneg %p125
        $region26: #{tpu_custom_call.1} parent=11 // pred_check_branch
          %177 = sbr.rel (%p175) target = $region28
        $region27: #{tpu_custom_call.1} parent=11 // pred_region
          _
        $region28: #{tpu_custom_call.1} parent=11 // pred_fallthru
          _
      $region12: #{tpu_custom_call.1} parent=5 // pred_fallthru
        _
      %p178 = scmp.lt.s32.totalorder %s15, 4
      // Predicated region
      $region29: #{tpu_custom_call.1} parent=5 // pred_check
        %p179 = pneg %p178
      $region30: #{tpu_custom_call.1} parent=5 // pred_check_branch
        %181 = sbr.rel (%p179) target = $region32
      $region31: #{tpu_custom_call.1} parent=5 // pred_region
        // Predicated region
        $region33: #{tpu_custom_call.1} parent=31 // pred_check
          %p182 = pneg %p35
        $region34: #{tpu_custom_call.1} parent=31 // pred_check_branch
          %184 = sbr.rel (%p182) target = $region36
        $region35: #{tpu_custom_call.1} parent=31 // pred_region
          %p185 = scmp.lt.s32.totalorder %s15, 3
          %s186 = scalar_select %p185, %s15, 3
          %s187 = smul.addr %s186, 8
          %s188 = smul.addr %s187, 8
          %s189 = scalar_lea.vmem %s0, %s188
        $region36: #{tpu_custom_call.1} parent=31 // pred_fallthru
          _
      $region32: #{tpu_custom_call.1} parent=5 // pred_fallthru
        _
      %p190 = scmp.le.s32.totalorder 1, %s15
      %p191 = scmp.lt.s32.totalorder %s15, 5
      %p192 = pnand %p190, %p191
      %p193 = pneg %p192
      // Predicated region
      $region37: #{tpu_custom_call.1} parent=5 // pred_check
        _
      $region38: #{tpu_custom_call.1} parent=5 // pred_check_branch
        %195 = sbr.rel (%p192) target = $region40
      $region39: #{tpu_custom_call.1} parent=5 // pred_region
        %s196 = ssub.s32 %s15, 1
        %p197 = scmp.lt.s32.totalorder %s20, 3
        %s198 = scalar_select %p197, %s20, 3
        %s199 = smul.addr %s198, 8
        %s200 = smul.addr %s199, 8
        %s201 = scalar_lea.vmem %s0, %s200
        %p202 = pneg %p41
        %p203 = pneg %p38
        %p204 = pneg %p62
        %p205 = pneg %p59
        %p206 = pneg %p83
        %p207 = pneg %p80
        %p208 = pneg %p104
        %p209 = pneg %p101
        %p210 = pneg %p125
        %p211 = pneg %p122
        %p212 = pneg %p151
        %p213 = pneg %p148
        %s214 = sand.u32 %s138, 1
        %s215 = scalar_lea.sflag [#allocation4], %s214
        %s216 = sand.u32 %s138, 1
        %s217 = smul.addr %s216, 8
        %s218 = scalar_lea.vmem [#allocation3], %s217
        %p219 = scmp.lt.s32.totalorder %s20, 3
        %s220 = scalar_select %p219, %s20, 3
        %s221 = smul.addr %s220, 8
        %s222 = smul.addr %s221, 8
        %s223 = scalar_lea.vmem %s0, %s222
        %v224 = vld [vmem:[%s223] sm:$0xff]
        %v225 = vld [vmem:[%s223 + $0x8] sm:$0xff]
        %v226 = vld [vmem:[%s223 + $0x10] sm:$0xff]
        %v227 = vld [vmem:[%s223 + $0x18] sm:$0xff]
        %v228 = vld [vmem:[%s223 + $0x20] sm:$0xff]
        %v229 = vld [vmem:[%s223 + $0x28] sm:$0xff]
        %v230 = vld [vmem:[%s223 + $0x30] sm:$0xff]
        %v231 = vld [vmem:[%s223 + $0x38] sm:$0xff]
        %v232 = vld [vmem:[%s1] sm:$0xff]
        %v233 = vld [vmem:[%s1 + $0x8] sm:$0xff]
        %v234 = vld [vmem:[%s1 + $0x10] sm:$0xff]
        %v235 = vld [vmem:[%s1 + $0x18] sm:$0xff]
        %vm236 = vcmask 261120
        %v238 = vsel %vm236, %v224, 0
        %v241 = vsel %vm236, %v225, 0
        %v244 = vsel %vm236, %v226, 0
        %v247 = vsel %vm236, %v227, 0
        %v250 = vsel %vm236, %v228, 0
        %v253 = vsel %vm236, %v229, 0
        %v256 = vsel %vm236, %v230, 0
        %v259 = vsel %vm236, %v231, 0
        %261 = vmatprep.subr.mxu0 0.0
        %262 = vmatpush1.msra.mxu0 0.0
        %263 = vmatprep.subr.mxu0 0.0
        %264 = vmatpush1.msra.mxu0 0.0
        %265 = vmatprep.subr.mxu0 0.0
        %266 = vmatpush1.msra.mxu0 0.0
        %267 = vmatprep.subr.mxu0 0.0
        %268 = vmatpush1.msra.mxu0 0.0
        %269 = vmatprep.subr.mxu0 0.0
        %270 = vmatpush1.msra.mxu0 0.0
        %271 = vmatprep.subr.mxu0 0.0
        %272 = vmatpush1.msra.mxu0 0.0
        %273 = vmatprep.subr.mxu0 0.0
        %274 = vmatpush1.msra.mxu0 0.0
        %275 = vmatprep.subr.mxu0 0.0
        %276 = vmatpush1.msra.mxu0 0.0
        %277 = vmatprep.subr.mxu0 0.0
        %278 = vmatpush1.msra.mxu0 0.0
        %279 = vmatprep.subr.mxu0 0.0
        %280 = vmatpush1.msra.mxu0 0.0
        %281 = vmatprep.subr.mxu0 0.0
        %282 = vmatpush1.msra.mxu0 0.0
        %283 = vmatprep.subr.mxu0 0.0
        %284 = vmatpush1.msra.mxu0 0.0
        %285 = vmatprep.subr.mxu0 0.0
        %286 = vmatpush1.msra.mxu0 %v235
        %287 = vmatprep.subr.mxu0 0.0
        %288 = vmatpush1.msra.mxu0 %v234
        %289 = vmatprep.subr.mxu0 0.0
        %290 = vmatpush1.msra.mxu0 %v233
        %291 = vmatprep.subr.mxu0 0.0
        %292 = vmatpush1.msra.mxu0 %v232
        %293 = vmatprep.subr.mxu0 0.0
        %294 = vmatpush2.msra.mxu0 0.0
        %295 = vmatprep.subr.mxu0 0.0
        %296 = vmatpush2.msra.mxu0 0.0
        %297 = vmatprep.subr.mxu0 0.0
        %298 = vmatpush2.msra.mxu0 0.0
        %299 = vmatprep.subr.mxu0 0.0
        %300 = vmatpush2.msra.mxu0 0.0
        %301 = vmatprep.subr.mxu0 0.0
        %302 = vmatpush2.msra.mxu0 0.0
        %303 = vmatprep.subr.mxu0 0.0
        %304 = vmatpush2.msra.mxu0 0.0
        %305 = vmatprep.subr.mxu0 0.0
        %306 = vmatpush2.msra.mxu0 0.0
        %307 = vmatprep.subr.mxu0 0.0
        %308 = vmatpush2.msra.mxu0 0.0
        %309 = vmatprep.subr.mxu0 0.0
        %310 = vmatpush2.msra.mxu0 0.0
        %311 = vmatprep.subr.mxu0 0.0
        %312 = vmatpush2.msra.mxu0 0.0
        %313 = vmatprep.subr.mxu0 0.0
        %314 = vmatpush2.msra.mxu0 0.0
        %315 = vmatprep.subr.mxu0 0.0
        %316 = vmatpush2.msra.mxu0 0.0
        %317 = vmatprep.subr.mxu0 0.0
        %318 = vmatpush2.msra.mxu0 0.0
        %319 = vmatprep.subr.mxu0 0.0
        %320 = vmatpush2.msra.mxu0 0.0
        %321 = vmatprep.subr.mxu0 0.0
        %322 = vmatpush2.msra.mxu0 0.0
        %323 = vmatprep.subr.mxu0 0.0
        %324 = vmatpush2.msra.mxu0 0.0
        %325 = vmatprep.mubr.f32.mxu0 0.0
        %326 = vmatmul.mubr.f32.gmra.mxu0 %v238
        %v327 = vpop.f32.mrf.mxu0
        %v328 = vadd.f32 0.0, %v327
        %v329 = vpop.f32.mrf.mxu0
        %330 = vmatprep.mubr.f32.mxu0 0.0
        %331 = vmatmul.mubr.f32.gmra.mxu0 %v241
        %v332 = vpop.f32.mrf.mxu0
        %v333 = vadd.f32 0.0, %v332
        %v334 = vpop.f32.mrf.mxu0
        %335 = vmatprep.mubr.f32.mxu0 0.0
        %336 = vmatmul.mubr.f32.gmra.mxu0 %v244
        %v337 = vpop.f32.mrf.mxu0
        %v338 = vadd.f32 0.0, %v337
        %v339 = vpop.f32.mrf.mxu0
        %340 = vmatprep.mubr.f32.mxu0 0.0
        %341 = vmatmul.mubr.f32.gmra.mxu0 %v247
        %v342 = vpop.f32.mrf.mxu0
        %v343 = vadd.f32 0.0, %v342
        %v344 = vpop.f32.mrf.mxu0
        %345 = vmatprep.mubr.f32.mxu0 0.0
        %346 = vmatmul.mubr.f32.gmra.mxu0 %v250
        %v347 = vpop.f32.mrf.mxu0
        %v348 = vadd.f32 0.0, %v347
        %v349 = vpop.f32.mrf.mxu0
        %350 = vmatprep.mubr.f32.mxu0 0.0
        %351 = vmatmul.mubr.f32.gmra.mxu0 %v253
        %v352 = vpop.f32.mrf.mxu0
        %v353 = vadd.f32 0.0, %v352
        %v354 = vpop.f32.mrf.mxu0
        %355 = vmatprep.mubr.f32.mxu0 0.0
        %356 = vmatmul.mubr.f32.gmra.mxu0 %v256
        %v357 = vpop.f32.mrf.mxu0
        %v358 = vadd.f32 0.0, %v357
        %v359 = vpop.f32.mrf.mxu0
        %360 = vmatprep.mubr.f32.mxu0 0.0
        %361 = vmatmul.mubr.f32.gmra.mxu0 %v259
        %v362 = vpop.f32.mrf.mxu0
        %v363 = vadd.f32 0.0, %v362
        %v364 = vpop.f32.mrf.mxu0
        %365 = vdwg.mxu0
        %v366 = vld [vmem:[%s2] sm:$0xff]
        %v367 = vld [vmem:[%s2 + $0x8] sm:$0xff]
        %v368 = vld [vmem:[%s2 + $0x10] sm:$0xff]
        %v369 = vld [vmem:[%s2 + $0x18] sm:$0xff]
        %v370 = vld [vmem:[%s2 + $0x20] sm:$0xff]
        %v371 = vld [vmem:[%s2 + $0x28] sm:$0xff]
        %v372 = vld [vmem:[%s2 + $0x30] sm:$0xff]
        %v373 = vld [vmem:[%s2 + $0x38] sm:$0xff]
        %vm374 = vcmask 523264
        %v376 = vsel %vm374, 0.0, 0
        %378 = vmatprep.subr.mxu0 0.0
        %379 = vmatpush1.msra.mxu0 0.0
        %380 = vmatprep.subr.mxu0 0.0
        %381 = vmatpush1.msra.mxu0 0.0
        %382 = vmatprep.subr.mxu0 0.0
        %383 = vmatpush1.msra.mxu0 0.0
        %384 = vmatprep.subr.mxu0 0.0
        %385 = vmatpush1.msra.mxu0 0.0
        %386 = vmatprep.subr.mxu0 0.0
        %387 = vmatpush1.msra.mxu0 0.0
        %388 = vmatprep.subr.mxu0 0.0
        %389 = vmatpush1.msra.mxu0 0.0
        %390 = vmatprep.subr.mxu0 0.0
        %391 = vmatpush1.msra.mxu0 0.0
        %392 = vmatprep.subr.mxu0 0.0
        %393 = vmatpush1.msra.mxu0 0.0
        %394 = vmatprep.subr.mxu0 0.0
        %395 = vmatpush1.msra.mxu0 %v373
        %396 = vmatprep.subr.mxu0 0.0
        %397 = vmatpush1.msra.mxu0 %v372
        %398 = vmatprep.subr.mxu0 0.0
        %399 = vmatpush1.msra.mxu0 %v371
        %400 = vmatprep.subr.mxu0 0.0
        %401 = vmatpush1.msra.mxu0 %v370
        %402 = vmatprep.subr.mxu0 0.0
        %403 = vmatpush1.msra.mxu0 %v369
        %404 = vmatprep.subr.mxu0 0.0
        %405 = vmatpush1.msra.mxu0 %v368
        %406 = vmatprep.subr.mxu0 0.0
        %407 = vmatpush1.msra.mxu0 %v367
        %408 = vmatprep.subr.mxu0 0.0
        %409 = vmatpush1.msra.mxu0 %v366
        %410 = vmatprep.subr.mxu0 0.0
        %411 = vmatpush2.msra.mxu0 0.0
        %412 = vmatprep.subr.mxu0 0.0
        %413 = vmatpush2.msra.mxu0 0.0
        %414 = vmatprep.subr.mxu0 0.0
        %415 = vmatpush2.msra.mxu0 0.0
        %416 = vmatprep.subr.mxu0 0.0
        %417 = vmatpush2.msra.mxu0 0.0
        %418 = vmatprep.subr.mxu0 0.0
        %419 = vmatpush2.msra.mxu0 0.0
        %420 = vmatprep.subr.mxu0 0.0
        %421 = vmatpush2.msra.mxu0 0.0
        %422 = vmatprep.subr.mxu0 0.0
        %423 = vmatpush2.msra.mxu0 0.0
        %424 = vmatprep.subr.mxu0 0.0
        %425 = vmatpush2.msra.mxu0 0.0
        %426 = vmatprep.subr.mxu0 0.0
        %427 = vmatpush2.msra.mxu0 0.0
        %428 = vmatprep.subr.mxu0 0.0
        %429 = vmatpush2.msra.mxu0 0.0
        %430 = vmatprep.subr.mxu0 0.0
        %431 = vmatpush2.msra.mxu0 0.0
        %432 = vmatprep.subr.mxu0 0.0
        %433 = vmatpush2.msra.mxu0 0.0
        %434 = vmatprep.subr.mxu0 0.0
        %435 = vmatpush2.msra.mxu0 0.0
        %436 = vmatprep.subr.mxu0 0.0
        %437 = vmatpush2.msra.mxu0 0.0
        %438 = vmatprep.subr.mxu0 0.0
        %439 = vmatpush2.msra.mxu0 0.0
        %440 = vmatprep.subr.mxu0 0.0
        %441 = vmatpush2.msra.mxu0 0.0
        %442 = vmatprep.mubr.f32.mxu0 0.0
        %443 = vmatmul.mubr.f32.gmra.mxu0 %v376
        %v444 = vpop.f32.mrf.mxu0
        %v445 = vadd.f32 0.0, %v444
        %v446 = vpop.f32.mrf.mxu0
        %447 = vdwg.mxu0
        %v448 = vadd.f32 %v328, %v445
        %v449 = vtanh.pop %v448
        %v451 = vsel %vm374, %v449, 0
        %453 = vmatprep.subr.mxu0 0.0
        %454 = vmatpush1.msra.mxu0 0.0
        %455 = vmatprep.subr.mxu0 0.0
        %456 = vmatpush1.msra.mxu0 0.0
        %457 = vmatprep.subr.mxu0 0.0
        %458 = vmatpush1.msra.mxu0 0.0
        %459 = vmatprep.subr.mxu0 0.0
        %460 = vmatpush1.msra.mxu0 0.0
        %461 = vmatprep.subr.mxu0 0.0
        %462 = vmatpush1.msra.mxu0 0.0
        %463 = vmatprep.subr.mxu0 0.0
        %464 = vmatpush1.msra.mxu0 0.0
        %465 = vmatprep.subr.mxu0 0.0
        %466 = vmatpush1.msra.mxu0 0.0
        %467 = vmatprep.subr.mxu0 0.0
        %468 = vmatpush1.msra.mxu0 0.0
        %469 = vmatprep.subr.mxu0 0.0
        %470 = vmatpush1.msra.mxu0 %v373
        %471 = vmatprep.subr.mxu0 0.0
        %472 = vmatpush1.msra.mxu0 %v372
        %473 = vmatprep.subr.mxu0 0.0
        %474 = vmatpush1.msra.mxu0 %v371
        %475 = vmatprep.subr.mxu0 0.0
        %476 = vmatpush1.msra.mxu0 %v370
        %477 = vmatprep.subr.mxu0 0.0
        %478 = vmatpush1.msra.mxu0 %v369
        %479 = vmatprep.subr.mxu0 0.0
        %480 = vmatpush1.msra.mxu0 %v368
        %481 = vmatprep.subr.mxu0 0.0
        %482 = vmatpush1.msra.mxu0 %v367
        %483 = vmatprep.subr.mxu0 0.0
        %484 = vmatpush1.msra.mxu0 %v366
        %485 = vmatprep.subr.mxu0 0.0
        %486 = vmatpush2.msra.mxu0 0.0
        %487 = vmatprep.subr.mxu0 0.0
        %488 = vmatpush2.msra.mxu0 0.0
        %489 = vmatprep.subr.mxu0 0.0
        %490 = vmatpush2.msra.mxu0 0.0
        %491 = vmatprep.subr.mxu0 0.0
        %492 = vmatpush2.msra.mxu0 0.0
        %493 = vmatprep.subr.mxu0 0.0
        %494 = vmatpush2.msra.mxu0 0.0
        %495 = vmatprep.subr.mxu0 0.0
        %496 = vmatpush2.msra.mxu0 0.0
        %497 = vmatprep.subr.mxu0 0.0
        %498 = vmatpush2.msra.mxu0 0.0
        %499 = vmatprep.subr.mxu0 0.0
        %500 = vmatpush2.msra.mxu0 0.0
        %501 = vmatprep.subr.mxu0 0.0
        %502 = vmatpush2.msra.mxu0 0.0
        %503 = vmatprep.subr.mxu0 0.0
        %504 = vmatpush2.msra.mxu0 0.0
        %505 = vmatprep.subr.mxu0 0.0
        %506 = vmatpush2.msra.mxu0 0.0
        %507 = vmatprep.subr.mxu0 0.0
        %508 = vmatpush2.msra.mxu0 0.0
        %509 = vmatprep.subr.mxu0 0.0
        %510 = vmatpush2.msra.mxu0 0.0
        %511 = vmatprep.subr.mxu0 0.0
        %512 = vmatpush2.msra.mxu0 0.0
        %513 = vmatprep.subr.mxu0 0.0
        %514 = vmatpush2.msra.mxu0 0.0
        %515 = vmatprep.subr.mxu0 0.0
        %516 = vmatpush2.msra.mxu0 0.0
        %517 = vmatprep.mubr.f32.mxu0 0.0
        %518 = vmatmul.mubr.f32.gmra.mxu0 %v451
        %v519 = vpop.f32.mrf.mxu0
        %v520 = vadd.f32 0.0, %v519
        %v521 = vpop.f32.mrf.mxu0
        %522 = vdwg.mxu0
        %v523 = vadd.f32 %v333, %v520
        %v524 = vtanh.pop %v523
        %v526 = vsel %vm374, %v524, 0
        %528 = vmatprep.subr.mxu0 0.0
        %529 = vmatpush1.msra.mxu0 0.0
        %530 = vmatprep.subr.mxu0 0.0
        %531 = vmatpush1.msra.mxu0 0.0
        %532 = vmatprep.subr.mxu0 0.0
        %533 = vmatpush1.msra.mxu0 0.0
        %534 = vmatprep.subr.mxu0 0.0
        %535 = vmatpush1.msra.mxu0 0.0
        %536 = vmatprep.subr.mxu0 0.0
        %537 = vmatpush1.msra.mxu0 0.0
        %538 = vmatprep.subr.mxu0 0.0
        %539 = vmatpush1.msra.mxu0 0.0
        %540 = vmatprep.subr.mxu0 0.0
        %541 = vmatpush1.msra.mxu0 0.0
        %542 = vmatprep.subr.mxu0 0.0
        %543 = vmatpush1.msra.mxu0 0.0
        %544 = vmatprep.subr.mxu0 0.0
        %545 = vmatpush1.msra.mxu0 %v373
        %546 = vmatprep.subr.mxu0 0.0
        %547 = vmatpush1.msra.mxu0 %v372
        %548 = vmatprep.subr.mxu0 0.0
        %549 = vmatpush1.msra.mxu0 %v371
        %550 = vmatprep.subr.mxu0 0.0
        %551 = vmatpush1.msra.mxu0 %v370
        %552 = vmatprep.subr.mxu0 0.0
        %553 = vmatpush1.msra.mxu0 %v369
        %554 = vmatprep.subr.mxu0 0.0
        %555 = vmatpush1.msra.mxu0 %v368
        %556 = vmatprep.subr.mxu0 0.0
        %557 = vmatpush1.msra.mxu0 %v367
        %558 = vmatprep.subr.mxu0 0.0
        %559 = vmatpush1.msra.mxu0 %v366
        %560 = vmatprep.subr.mxu0 0.0
        %561 = vmatpush2.msra.mxu0 0.0
        %562 = vmatprep.subr.mxu0 0.0
        %563 = vmatpush2.msra.mxu0 0.0
        %564 = vmatprep.subr.mxu0 0.0
        %565 = vmatpush2.msra.mxu0 0.0
        %566 = vmatprep.subr.mxu0 0.0
        %567 = vmatpush2.msra.mxu0 0.0
        %568 = vmatprep.subr.mxu0 0.0
        %569 = vmatpush2.msra.mxu0 0.0
        %570 = vmatprep.subr.mxu0 0.0
        %571 = vmatpush2.msra.mxu0 0.0
        %572 = vmatprep.subr.mxu0 0.0
        %573 = vmatpush2.msra.mxu0 0.0
        %574 = vmatprep.subr.mxu0 0.0
        %575 = vmatpush2.msra.mxu0 0.0
        %576 = vmatprep.subr.mxu0 0.0
        %577 = vmatpush2.msra.mxu0 0.0
        %578 = vmatprep.subr.mxu0 0.0
        %579 = vmatpush2.msra.mxu0 0.0
        %580 = vmatprep.subr.mxu0 0.0
        %581 = vmatpush2.msra.mxu0 0.0
        %582 = vmatprep.subr.mxu0 0.0
        %583 = vmatpush2.msra.mxu0 0.0
        %584 = vmatprep.subr.mxu0 0.0
        %585 = vmatpush2.msra.mxu0 0.0
        %586 = vmatprep.subr.mxu0 0.0
        %587 = vmatpush2.msra.mxu0 0.0
        %588 = vmatprep.subr.mxu0 0.0
        %589 = vmatpush2.msra.mxu0 0.0
        %590 = vmatprep.subr.mxu0 0.0
        %591 = vmatpush2.msra.mxu0 0.0
        %592 = vmatprep.mubr.f32.mxu0 0.0
        %593 = vmatmul.mubr.f32.gmra.mxu0 %v526
        %v594 = vpop.f32.mrf.mxu0
        %v595 = vadd.f32 0.0, %v594
        %v596 = vpop.f32.mrf.mxu0
        %597 = vdwg.mxu0
        %v598 = vadd.f32 %v338, %v595
        %v599 = vtanh.pop %v598
        %v601 = vsel %vm374, %v599, 0
        %603 = vmatprep.subr.mxu0 0.0
        %604 = vmatpush1.msra.mxu0 0.0
        %605 = vmatprep.subr.mxu0 0.0
        %606 = vmatpush1.msra.mxu0 0.0
        %607 = vmatprep.subr.mxu0 0.0
        %608 = vmatpush1.msra.mxu0 0.0
        %609 = vmatprep.subr.mxu0 0.0
        %610 = vmatpush1.msra.mxu0 0.0
        %611 = vmatprep.subr.mxu0 0.0
        %612 = vmatpush1.msra.mxu0 0.0
        %613 = vmatprep.subr.mxu0 0.0
        %614 = vmatpush1.msra.mxu0 0.0
        %615 = vmatprep.subr.mxu0 0.0
        %616 = vmatpush1.msra.mxu0 0.0
        %617 = vmatprep.subr.mxu0 0.0
        %618 = vmatpush1.msra.mxu0 0.0
        %619 = vmatprep.subr.mxu0 0.0
        %620 = vmatpush1.msra.mxu0 %v373
        %621 = vmatprep.subr.mxu0 0.0
        %622 = vmatpush1.msra.mxu0 %v372
        %623 = vmatprep.subr.mxu0 0.0
        %624 = vmatpush1.msra.mxu0 %v371
        %625 = vmatprep.subr.mxu0 0.0
        %626 = vmatpush1.msra.mxu0 %v370
        %627 = vmatprep.subr.mxu0 0.0
        %628 = vmatpush1.msra.mxu0 %v369
        %629 = vmatprep.subr.mxu0 0.0
        %630 = vmatpush1.msra.mxu0 %v368
        %631 = vmatprep.subr.mxu0 0.0
        %632 = vmatpush1.msra.mxu0 %v367
        %633 = vmatprep.subr.mxu0 0.0
        %634 = vmatpush1.msra.mxu0 %v366
        %635 = vmatprep.subr.mxu0 0.0
        %636 = vmatpush2.msra.mxu0 0.0
        %637 = vmatprep.subr.mxu0 0.0
        %638 = vmatpush2.msra.mxu0 0.0
        %639 = vmatprep.subr.mxu0 0.0
        %640 = vmatpush2.msra.mxu0 0.0
        %641 = vmatprep.subr.mxu0 0.0
        %642 = vmatpush2.msra.mxu0 0.0
        %643 = vmatprep.subr.mxu0 0.0
        %644 = vmatpush2.msra.mxu0 0.0
        %645 = vmatprep.subr.mxu0 0.0
        %646 = vmatpush2.msra.mxu0 0.0
        %647 = vmatprep.subr.mxu0 0.0
        %648 = vmatpush2.msra.mxu0 0.0
        %649 = vmatprep.subr.mxu0 0.0
        %650 = vmatpush2.msra.mxu0 0.0
        %651 = vmatprep.subr.mxu0 0.0
        %652 = vmatpush2.msra.mxu0 0.0
        %653 = vmatprep.subr.mxu0 0.0
        %654 = vmatpush2.msra.mxu0 0.0
        %655 = vmatprep.subr.mxu0 0.0
        %656 = vmatpush2.msra.mxu0 0.0
        %657 = vmatprep.subr.mxu0 0.0
        %658 = vmatpush2.msra.mxu0 0.0
        %659 = vmatprep.subr.mxu0 0.0
        %660 = vmatpush2.msra.mxu0 0.0
        %661 = vmatprep.subr.mxu0 0.0
        %662 = vmatpush2.msra.mxu0 0.0
        %663 = vmatprep.subr.mxu0 0.0
        %664 = vmatpush2.msra.mxu0 0.0
        %665 = vmatprep.subr.mxu0 0.0
        %666 = vmatpush2.msra.mxu0 0.0
        %667 = vmatprep.mubr.f32.mxu0 0.0
        %668 = vmatmul.mubr.f32.gmra.mxu0 %v601
        %v669 = vpop.f32.mrf.mxu0
        %v670 = vadd.f32 0.0, %v669
        %v671 = vpop.f32.mrf.mxu0
        %672 = vdwg.mxu0
        %v673 = vadd.f32 %v343, %v670
        %v674 = vtanh.pop %v673
        %v676 = vsel %vm374, %v674, 0
        %678 = vmatprep.subr.mxu0 0.0
        %679 = vmatpush1.msra.mxu0 0.0
        %680 = vmatprep.subr.mxu0 0.0
        %681 = vmatpush1.msra.mxu0 0.0
        %682 = vmatprep.subr.mxu0 0.0
        %683 = vmatpush1.msra.mxu0 0.0
        %684 = vmatprep.subr.mxu0 0.0
        %685 = vmatpush1.msra.mxu0 0.0
        %686 = vmatprep.subr.mxu0 0.0
        %687 = vmatpush1.msra.mxu0 0.0
        %688 = vmatprep.subr.mxu0 0.0
        %689 = vmatpush1.msra.mxu0 0.0
        %690 = vmatprep.subr.mxu0 0.0
        %691 = vmatpush1.msra.mxu0 0.0
        %692 = vmatprep.subr.mxu0 0.0
        %693 = vmatpush1.msra.mxu0 0.0
        %694 = vmatprep.subr.mxu0 0.0
        %695 = vmatpush1.msra.mxu0 %v373
        %696 = vmatprep.subr.mxu0 0.0
        %697 = vmatpush1.msra.mxu0 %v372
        %698 = vmatprep.subr.mxu0 0.0
        %699 = vmatpush1.msra.mxu0 %v371
        %700 = vmatprep.subr.mxu0 0.0
        %701 = vmatpush1.msra.mxu0 %v370
        %702 = vmatprep.subr.mxu0 0.0
        %703 = vmatpush1.msra.mxu0 %v369
        %704 = vmatprep.subr.mxu0 0.0
        %705 = vmatpush1.msra.mxu0 %v368
        %706 = vmatprep.subr.mxu0 0.0
        %707 = vmatpush1.msra.mxu0 %v367
        %708 = vmatprep.subr.mxu0 0.0
        %709 = vmatpush1.msra.mxu0 %v366
        %710 = vmatprep.subr.mxu0 0.0
        %711 = vmatpush2.msra.mxu0 0.0
        %712 = vmatprep.subr.mxu0 0.0
        %713 = vmatpush2.msra.mxu0 0.0
        %714 = vmatprep.subr.mxu0 0.0
        %715 = vmatpush2.msra.mxu0 0.0
        %716 = vmatprep.subr.mxu0 0.0
        %717 = vmatpush2.msra.mxu0 0.0
        %718 = vmatprep.subr.mxu0 0.0
        %719 = vmatpush2.msra.mxu0 0.0
        %720 = vmatprep.subr.mxu0 0.0
        %721 = vmatpush2.msra.mxu0 0.0
        %722 = vmatprep.subr.mxu0 0.0
        %723 = vmatpush2.msra.mxu0 0.0
        %724 = vmatprep.subr.mxu0 0.0
        %725 = vmatpush2.msra.mxu0 0.0
        %726 = vmatprep.subr.mxu0 0.0
        %727 = vmatpush2.msra.mxu0 0.0
        %728 = vmatprep.subr.mxu0 0.0
        %729 = vmatpush2.msra.mxu0 0.0
        %730 = vmatprep.subr.mxu0 0.0
        %731 = vmatpush2.msra.mxu0 0.0
        %732 = vmatprep.subr.mxu0 0.0
        %733 = vmatpush2.msra.mxu0 0.0
        %734 = vmatprep.subr.mxu0 0.0
        %735 = vmatpush2.msra.mxu0 0.0
        %736 = vmatprep.subr.mxu0 0.0
        %737 = vmatpush2.msra.mxu0 0.0
        %738 = vmatprep.subr.mxu0 0.0
        %739 = vmatpush2.msra.mxu0 0.0
        %740 = vmatprep.subr.mxu0 0.0
        %741 = vmatpush2.msra.mxu0 0.0
        %742 = vmatprep.mubr.f32.mxu0 0.0
        %743 = vmatmul.mubr.f32.gmra.mxu0 %v676
        %v744 = vpop.f32.mrf.mxu0
        %v745 = vadd.f32 0.0, %v744
        %v746 = vpop.f32.mrf.mxu0
        %747 = vdwg.mxu0
        %v748 = vadd.f32 %v348, %v745
        %v749 = vtanh.pop %v748
        %v751 = vsel %vm374, %v749, 0
        %753 = vmatprep.subr.mxu0 0.0
        %754 = vmatpush1.msra.mxu0 0.0
        %755 = vmatprep.subr.mxu0 0.0
        %756 = vmatpush1.msra.mxu0 0.0
        %757 = vmatprep.subr.mxu0 0.0
        %758 = vmatpush1.msra.mxu0 0.0
        %759 = vmatprep.subr.mxu0 0.0
        %760 = vmatpush1.msra.mxu0 0.0
        %761 = vmatprep.subr.mxu0 0.0
        %762 = vmatpush1.msra.mxu0 0.0
        %763 = vmatprep.subr.mxu0 0.0
        %764 = vmatpush1.msra.mxu0 0.0
        %765 = vmatprep.subr.mxu0 0.0
        %766 = vmatpush1.msra.mxu0 0.0
        %767 = vmatprep.subr.mxu0 0.0
        %768 = vmatpush1.msra.mxu0 0.0
        %769 = vmatprep.subr.mxu0 0.0
        %770 = vmatpush1.msra.mxu0 %v373
        %771 = vmatprep.subr.mxu0 0.0
        %772 = vmatpush1.msra.mxu0 %v372
        %773 = vmatprep.subr.mxu0 0.0
        %774 = vmatpush1.msra.mxu0 %v371
        %775 = vmatprep.subr.mxu0 0.0
        %776 = vmatpush1.msra.mxu0 %v370
        %777 = vmatprep.subr.mxu0 0.0
        %778 = vmatpush1.msra.mxu0 %v369
        %779 = vmatprep.subr.mxu0 0.0
        %780 = vmatpush1.msra.mxu0 %v368
        %781 = vmatprep.subr.mxu0 0.0
        %782 = vmatpush1.msra.mxu0 %v367
        %783 = vmatprep.subr.mxu0 0.0
        %784 = vmatpush1.msra.mxu0 %v366
        %785 = vmatprep.subr.mxu0 0.0
        %786 = vmatpush2.msra.mxu0 0.0
        %787 = vmatprep.subr.mxu0 0.0
        %788 = vmatpush2.msra.mxu0 0.0
        %789 = vmatprep.subr.mxu0 0.0
        %790 = vmatpush2.msra.mxu0 0.0
        %791 = vmatprep.subr.mxu0 0.0
        %792 = vmatpush2.msra.mxu0 0.0
        %793 = vmatprep.subr.mxu0 0.0
        %794 = vmatpush2.msra.mxu0 0.0
        %795 = vmatprep.subr.mxu0 0.0
        %796 = vmatpush2.msra.mxu0 0.0
        %797 = vmatprep.subr.mxu0 0.0
        %798 = vmatpush2.msra.mxu0 0.0
        %799 = vmatprep.subr.mxu0 0.0
        %800 = vmatpush2.msra.mxu0 0.0
        %801 = vmatprep.subr.mxu0 0.0
        %802 = vmatpush2.msra.mxu0 0.0
        %803 = vmatprep.subr.mxu0 0.0
        %804 = vmatpush2.msra.mxu0 0.0
        %805 = vmatprep.subr.mxu0 0.0
        %806 = vmatpush2.msra.mxu0 0.0
        %807 = vmatprep.subr.mxu0 0.0
        %808 = vmatpush2.msra.mxu0 0.0
        %809 = vmatprep.subr.mxu0 0.0
        %810 = vmatpush2.msra.mxu0 0.0
        %811 = vmatprep.subr.mxu0 0.0
        %812 = vmatpush2.msra.mxu0 0.0
        %813 = vmatprep.subr.mxu0 0.0
        %814 = vmatpush2.msra.mxu0 0.0
        %815 = vmatprep.subr.mxu0 0.0
        %816 = vmatpush2.msra.mxu0 0.0
        %817 = vmatprep.mubr.f32.mxu0 0.0
        %818 = vmatmul.mubr.f32.gmra.mxu0 %v751
        %v819 = vpop.f32.mrf.mxu0
        %v820 = vadd.f32 0.0, %v819
        %v821 = vpop.f32.mrf.mxu0
        %822 = vdwg.mxu0
        %v823 = vadd.f32 %v353, %v820
        %v824 = vtanh.pop %v823
        %v826 = vsel %vm374, %v824, 0
        %828 = vmatprep.subr.mxu0 0.0
        %829 = vmatpush1.msra.mxu0 0.0
        %830 = vmatprep.subr.mxu0 0.0
        %831 = vmatpush1.msra.mxu0 0.0
        %832 = vmatprep.subr.mxu0 0.0
        %833 = vmatpush1.msra.mxu0 0.0
        %834 = vmatprep.subr.mxu0 0.0
        %835 = vmatpush1.msra.mxu0 0.0
        %836 = vmatprep.subr.mxu0 0.0
        %837 = vmatpush1.msra.mxu0 0.0
        %838 = vmatprep.subr.mxu0 0.0
        %839 = vmatpush1.msra.mxu0 0.0
        %840 = vmatprep.subr.mxu0 0.0
        %841 = vmatpush1.msra.mxu0 0.0
        %842 = vmatprep.subr.mxu0 0.0
        %843 = vmatpush1.msra.mxu0 0.0
        %844 = vmatprep.subr.mxu0 0.0
        %845 = vmatpush1.msra.mxu0 %v373
        %846 = vmatprep.subr.mxu0 0.0
        %847 = vmatpush1.msra.mxu0 %v372
        %848 = vmatprep.subr.mxu0 0.0
        %849 = vmatpush1.msra.mxu0 %v371
        %850 = vmatprep.subr.mxu0 0.0
        %851 = vmatpush1.msra.mxu0 %v370
        %852 = vmatprep.subr.mxu0 0.0
        %853 = vmatpush1.msra.mxu0 %v369
        %854 = vmatprep.subr.mxu0 0.0
        %855 = vmatpush1.msra.mxu0 %v368
        %856 = vmatprep.subr.mxu0 0.0
        %857 = vmatpush1.msra.mxu0 %v367
        %858 = vmatprep.subr.mxu0 0.0
        %859 = vmatpush1.msra.mxu0 %v366
        %860 = vmatprep.subr.mxu0 0.0
        %861 = vmatpush2.msra.mxu0 0.0
        %862 = vmatprep.subr.mxu0 0.0
        %863 = vmatpush2.msra.mxu0 0.0
        %864 = vmatprep.subr.mxu0 0.0
        %865 = vmatpush2.msra.mxu0 0.0
        %866 = vmatprep.subr.mxu0 0.0
        %867 = vmatpush2.msra.mxu0 0.0
        %868 = vmatprep.subr.mxu0 0.0
        %869 = vmatpush2.msra.mxu0 0.0
        %870 = vmatprep.subr.mxu0 0.0
        %871 = vmatpush2.msra.mxu0 0.0
        %872 = vmatprep.subr.mxu0 0.0
        %873 = vmatpush2.msra.mxu0 0.0
        %874 = vmatprep.subr.mxu0 0.0
        %875 = vmatpush2.msra.mxu0 0.0
        %876 = vmatprep.subr.mxu0 0.0
        %877 = vmatpush2.msra.mxu0 0.0
        %878 = vmatprep.subr.mxu0 0.0
        %879 = vmatpush2.msra.mxu0 0.0
        %880 = vmatprep.subr.mxu0 0.0
        %881 = vmatpush2.msra.mxu0 0.0
        %882 = vmatprep.subr.mxu0 0.0
        %883 = vmatpush2.msra.mxu0 0.0
        %884 = vmatprep.subr.mxu0 0.0
        %885 = vmatpush2.msra.mxu0 0.0
        %886 = vmatprep.subr.mxu0 0.0
        %887 = vmatpush2.msra.mxu0 0.0
        %888 = vmatprep.subr.mxu0 0.0
        %889 = vmatpush2.msra.mxu0 0.0
        %890 = vmatprep.subr.mxu0 0.0
        %891 = vmatpush2.msra.mxu0 0.0
        %892 = vmatprep.mubr.f32.mxu0 0.0
        %893 = vmatmul.mubr.f32.gmra.mxu0 %v826
        %v894 = vpop.f32.mrf.mxu0
        %v895 = vadd.f32 0.0, %v894
        %v896 = vpop.f32.mrf.mxu0
        %897 = vdwg.mxu0
        %v898 = vadd.f32 %v358, %v895
        %v899 = vtanh.pop %v898
        %v901 = vsel %vm374, %v899, 0
        %903 = vmatprep.subr.mxu0 0.0
        %904 = vmatpush1.msra.mxu0 0.0
        %905 = vmatprep.subr.mxu0 0.0
        %906 = vmatpush1.msra.mxu0 0.0
        %907 = vmatprep.subr.mxu0 0.0
        %908 = vmatpush1.msra.mxu0 0.0
        %909 = vmatprep.subr.mxu0 0.0
        %910 = vmatpush1.msra.mxu0 0.0
        %911 = vmatprep.subr.mxu0 0.0
        %912 = vmatpush1.msra.mxu0 0.0
        %913 = vmatprep.subr.mxu0 0.0
        %914 = vmatpush1.msra.mxu0 0.0
        %915 = vmatprep.subr.mxu0 0.0
        %916 = vmatpush1.msra.mxu0 0.0
        %917 = vmatprep.subr.mxu0 0.0
        %918 = vmatpush1.msra.mxu0 0.0
        %919 = vmatprep.subr.mxu0 0.0
        %920 = vmatpush1.msra.mxu0 %v373
        %921 = vmatprep.subr.mxu0 0.0
        %922 = vmatpush1.msra.mxu0 %v372
        %923 = vmatprep.subr.mxu0 0.0
        %924 = vmatpush1.msra.mxu0 %v371
        %925 = vmatprep.subr.mxu0 0.0
        %926 = vmatpush1.msra.mxu0 %v370
        %927 = vmatprep.subr.mxu0 0.0
        %928 = vmatpush1.msra.mxu0 %v369
        %929 = vmatprep.subr.mxu0 0.0
        %930 = vmatpush1.msra.mxu0 %v368
        %931 = vmatprep.subr.mxu0 0.0
        %932 = vmatpush1.msra.mxu0 %v367
        %933 = vmatprep.subr.mxu0 0.0
        %934 = vmatpush1.msra.mxu0 %v366
        %935 = vmatprep.subr.mxu0 0.0
        %936 = vmatpush2.msra.mxu0 0.0
        %937 = vmatprep.subr.mxu0 0.0
        %938 = vmatpush2.msra.mxu0 0.0
        %939 = vmatprep.subr.mxu0 0.0
        %940 = vmatpush2.msra.mxu0 0.0
        %941 = vmatprep.subr.mxu0 0.0
        %942 = vmatpush2.msra.mxu0 0.0
        %943 = vmatprep.subr.mxu0 0.0
        %944 = vmatpush2.msra.mxu0 0.0
        %945 = vmatprep.subr.mxu0 0.0
        %946 = vmatpush2.msra.mxu0 0.0
        %947 = vmatprep.subr.mxu0 0.0
        %948 = vmatpush2.msra.mxu0 0.0
        %949 = vmatprep.subr.mxu0 0.0
        %950 = vmatpush2.msra.mxu0 0.0
        %951 = vmatprep.subr.mxu0 0.0
        %952 = vmatpush2.msra.mxu0 0.0
        %953 = vmatprep.subr.mxu0 0.0
        %954 = vmatpush2.msra.mxu0 0.0
        %955 = vmatprep.subr.mxu0 0.0
        %956 = vmatpush2.msra.mxu0 0.0
        %957 = vmatprep.subr.mxu0 0.0
        %958 = vmatpush2.msra.mxu0 0.0
        %959 = vmatprep.subr.mxu0 0.0
        %960 = vmatpush2.msra.mxu0 0.0
        %961 = vmatprep.subr.mxu0 0.0
        %962 = vmatpush2.msra.mxu0 0.0
        %963 = vmatprep.subr.mxu0 0.0
        %964 = vmatpush2.msra.mxu0 0.0
        %965 = vmatprep.subr.mxu0 0.0
        %966 = vmatpush2.msra.mxu0 0.0
        %967 = vmatprep.mubr.f32.mxu0 0.0
        %968 = vmatmul.mubr.f32.gmra.mxu0 %v901
        %v969 = vpop.f32.mrf.mxu0
        %v970 = vadd.f32 0.0, %v969
        %v971 = vpop.f32.mrf.mxu0
        %972 = vdwg.mxu0
        %v973 = vadd.f32 %v363, %v970
        %v974 = vtanh.pop %v973
        %v975 = vld [vmem:[%s3] sm:$0xff]
        %v976 = vld [vmem:[%s3 + $0x8] sm:$0xff]
        %v977 = vld [vmem:[%s3 + $0x10] sm:$0xff]
        %v978 = vld [vmem:[%s3 + $0x18] sm:$0xff]
        %v979 = vld [vmem:[%s3 + $0x20] sm:$0xff]
        %v980 = vld [vmem:[%s3 + $0x28] sm:$0xff]
        %v981 = vld [vmem:[%s3 + $0x30] sm:$0xff]
        %v982 = vld [vmem:[%s3 + $0x38] sm:$0xff]
        %s983 = sld [smem:[#allocation2]]
        %v984 = vstv %s983
        %v986 = vsel %vm374, %v974, 0
        %988 = vmatprep.subr.mxu0 0.0
        %989 = vmatpush1.msra.mxu0 0.0
        %990 = vmatprep.subr.mxu0 0.0
        %991 = vmatpush1.msra.mxu0 0.0
        %992 = vmatprep.subr.mxu0 0.0
        %993 = vmatpush1.msra.mxu0 0.0
        %994 = vmatprep.subr.mxu0 0.0
        %995 = vmatpush1.msra.mxu0 0.0
        %996 = vmatprep.subr.mxu0 0.0
        %997 = vmatpush1.msra.mxu0 0.0
        %998 = vmatprep.subr.mxu0 0.0
        %999 = vmatpush1.msra.mxu0 0.0
        %1000 = vmatprep.subr.mxu0 0.0
        %1001 = vmatpush1.msra.mxu0 0.0
        %1002 = vmatprep.subr.mxu0 0.0
        %1003 = vmatpush1.msra.mxu0 0.0
        %1004 = vmatprep.subr.mxu0 0.0
        %1005 = vmatpush1.msra.mxu0 %v982
        %1006 = vmatprep.subr.mxu0 0.0
        %1007 = vmatpush1.msra.mxu0 %v981
        %1008 = vmatprep.subr.mxu0 0.0
        %1009 = vmatpush1.msra.mxu0 %v980
        %1010 = vmatprep.subr.mxu0 0.0
        %1011 = vmatpush1.msra.mxu0 %v979
        %1012 = vmatprep.subr.mxu0 0.0
        %1013 = vmatpush1.msra.mxu0 %v978
        %1014 = vmatprep.subr.mxu0 0.0
        %1015 = vmatpush1.msra.mxu0 %v977
        %1016 = vmatprep.subr.mxu0 0.0
        %1017 = vmatpush1.msra.mxu0 %v976
        %1018 = vmatprep.subr.mxu0 0.0
        %1019 = vmatpush1.msra.mxu0 %v975
        %1020 = vmatprep.subr.mxu0 0.0
        %1021 = vmatpush2.msra.mxu0 0.0
        %1022 = vmatprep.subr.mxu0 0.0
        %1023 = vmatpush2.msra.mxu0 0.0
        %1024 = vmatprep.subr.mxu0 0.0
        %1025 = vmatpush2.msra.mxu0 0.0
        %1026 = vmatprep.subr.mxu0 0.0
        %1027 = vmatpush2.msra.mxu0 0.0
        %1028 = vmatprep.subr.mxu0 0.0
        %1029 = vmatpush2.msra.mxu0 0.0
        %1030 = vmatprep.subr.mxu0 0.0
        %1031 = vmatpush2.msra.mxu0 0.0
        %1032 = vmatprep.subr.mxu0 0.0
        %1033 = vmatpush2.msra.mxu0 0.0
        %1034 = vmatprep.subr.mxu0 0.0
        %1035 = vmatpush2.msra.mxu0 0.0
        %1036 = vmatprep.subr.mxu0 0.0
        %1037 = vmatpush2.msra.mxu0 0.0
        %1038 = vmatprep.subr.mxu0 0.0
        %1039 = vmatpush2.msra.mxu0 0.0
        %1040 = vmatprep.subr.mxu0 0.0
        %1041 = vmatpush2.msra.mxu0 0.0
        %1042 = vmatprep.subr.mxu0 0.0
        %1043 = vmatpush2.msra.mxu0 0.0
        %1044 = vmatprep.subr.mxu0 0.0
        %1045 = vmatpush2.msra.mxu0 0.0
        %1046 = vmatprep.subr.mxu0 0.0
        %1047 = vmatpush2.msra.mxu0 0.0
        %1048 = vmatprep.subr.mxu0 0.0
        %1049 = vmatpush2.msra.mxu0 0.0
        %1050 = vmatprep.subr.mxu0 0.0
        %1051 = vmatpush2.msra.mxu0 0.0
        %1052 = vmatprep.mubr.f32.mxu0 0.0
        %1053 = vmatmul.mubr.f32.gmra.mxu0 %v986
        %v1054 = vpop.f32.mrf.mxu0
        %v1055 = vadd.f32 %v984, %v1054
        %v1056 = vpop.f32.mrf.mxu0
        %1057 = vdwg.mxu0
        %1058 = vst [vmem:[%s218] sm:$0xff] %v1055
        %s1059 = sand.u32 %s138, 1
        %s1060 = scalar_lea.sflag [#allocation4], %s1059
        %s1061 = sand.u32 %s138, 1
        %s1062 = smul.addr %s1061, 8
        %s1063 = scalar_lea.vmem [#allocation3], %s1062
        // Predicated region
        $region41: #{tpu_custom_call.1} parent=39 // pred_check
          %p1064 = pneg %p148
        $region42: #{tpu_custom_call.1} parent=39 // pred_check_branch
          %1066 = sbr.rel (%p1064) target = $region44
        $region43: #{tpu_custom_call.1} parent=39 // pred_region
          %s1068 = ssub.s32 128, 128
          %1069 = vsyncadd %s1060, %s1068
          %s1070 = smul.addr %s20, 128
          %s1071 = scalar_lea.hbm %s5, %s1070
          %s1073 = sshll.u32 %s1063, 4
          %s1074 = int_to_ptr.vmem [resolvable:$true] %s1073
          %1076 = dma.vmem_to_hbm [thread:$0]  %s1074, 128, %s1071, %s1060
        $region44: #{tpu_custom_call.1} parent=39 // pred_fallthru
          _
      $region40: #{tpu_custom_call.1} parent=5 // pred_fallthru
        _
      %p1077 = scmp.le.s32.totalorder 2, %s15
      // Predicated region
      $region45: #{tpu_custom_call.1} parent=5 // pred_check
        %p1078 = pneg %p1077
      $region46: #{tpu_custom_call.1} parent=5 // pred_check_branch
        %1080 = sbr.rel (%p1078) target = $region48
      $region47: #{tpu_custom_call.1} parent=5 // pred_region
        %s1081 = ssub.s32 %s15, 2
        // Predicated region
        $region49: #{tpu_custom_call.1} parent=47 // pred_check
          %p1082 = pneg %p154
        $region50: #{tpu_custom_call.1} parent=47 // pred_check_branch
          %1084 = sbr.rel (%p1082) target = $region52
        $region51: #{tpu_custom_call.1} parent=47 // pred_region
          %s1085 = sand.u32 %s139, 1
          %s1086 = scalar_lea.sflag [#allocation4], %s1085
          %s1087 = sand.u32 %s139, 1
          %s1088 = smul.addr %s1087, 8
          %s1089 = scalar_lea.vmem [#allocation3], %s1088
          %1090 = dma.done %s1086, 128
        $region52: #{tpu_custom_call.1} parent=47 // pred_fallthru
          _
      $region48: #{tpu_custom_call.1} parent=5 // pred_fallthru
        _
    $region6: #{tpu_custom_call.1} parent=1 // loop_footer
      %s19 = sadd.s32 1, %s15
    $region7: #{tpu_custom_call.1} parent=1 // loop_footer_branch
      %14 = sbr.rel target = $region3
    $region8: #{tpu_custom_call.1} parent=1 // loop_exit
      _
    %1091 = vsyncpa [#allocation4], 1
    %s1092 = scalar_lea.sflag [#allocation4], 1
    %1093 = vsyncpa %s1092, 1

</llo_original>
